<compile_context>
chip_gen: v7x
topology: tpu7x:2x2x1
jax: 0.10.0
libtpu: 0.0.40
codegen_flags: <defaults>
</compile_context>

<pallas_src>
import functools

import jax
import jax.numpy as jnp
from jax.experimental import pallas as pl
from jax.experimental.pallas import tpu as pltpu


LANE = 128


def _round_up(n, m):
    return ((n + m - 1) // m) * m


def _mlp_kernel(x_ref, w1_ref, b1_ref, w2_ref, b2_ref,
                w3_ref, b3_ref, w4_ref, b4_ref, o_ref):
    """Fused 4x (matmul + bias + relu) on one batch tile; everything in VMEM."""
    cdt = w1_ref.dtype  # MXU compute dtype (bf16 or f32); accumulation is f32
    h = jnp.dot(x_ref[...], w1_ref[...], preferred_element_type=jnp.float32)
    h = jnp.maximum(h + b1_ref[...], 0.0).astype(cdt)
    h = jnp.dot(h, w2_ref[...], preferred_element_type=jnp.float32)
    h = jnp.maximum(h + b2_ref[...], 0.0).astype(cdt)
    h = jnp.dot(h, w3_ref[...], preferred_element_type=jnp.float32)
    h = jnp.maximum(h + b3_ref[...], 0.0).astype(cdt)
    h = jnp.dot(h, w4_ref[...], preferred_element_type=jnp.float32)
    o_ref[...] = jnp.maximum(h + b4_ref[...], 0.0).astype(o_ref.dtype)


def prepare_params(params, *, compute_dtype=jnp.bfloat16):
    """One-time weight prep (outside the per-call hot path).

    - Transpose PyTorch-layout (out, in) weights to (in, out).
    - Zero-pad hidden and output feature dims up to a multiple of 128 lanes
      (exact: zero weights/bias + relu keep padded columns at exactly 0).
    - Cast weights to the MXU compute dtype; biases stay f32 for the
      f32-accumulated bias+relu epilogue.
    """
    hidden, in_size = params["w1"].shape
    out_size = params["w4"].shape[0]
    hp = _round_up(hidden, LANE)
    op = _round_up(out_size, LANE)

    def pad_w(w_t, rows, cols):  # w_t is already (in, out)
        z = jnp.zeros((rows, cols), compute_dtype)
        return z.at[: w_t.shape[0], : w_t.shape[1]].set(w_t.astype(compute_dtype))

    def pad_b(b, cols):
        z = jnp.zeros((1, cols), jnp.float32)
        return z.at[0, : b.shape[0]].set(b.astype(jnp.float32))

    return {
        "w1": pad_w(params["w1"].T, in_size, hp),
        "b1": pad_b(params["b1"], hp),
        "w2": pad_w(params["w2"].T, hp, hp),
        "b2": pad_b(params["b2"], hp),
        "w3": pad_w(params["w3"].T, hp, hp),
        "b3": pad_b(params["b3"], hp),
        "w4": pad_w(params["w4"].T, hp, op),
        "b4": pad_b(params["b4"], op),
    }


def _default_batch_tile(B):
    """Large tiles to amortize per-step overhead; >=2 grid steps when possible
    so v7x megacore can shard the 'parallel' batch axis across both cores."""
    if B <= 256:
        if B >= 16 and B % 2 == 0 and (B // 2) % 8 == 0:
            return B // 2
        return B
    return min(1024, _round_up(pl.cdiv(B, 2), 8))


@functools.partial(jax.jit, static_argnames=("out_size", "batch_tile"))
def mlp_forward(x, prepared, *, out_size, batch_tile=None):
    """prepared: output of prepare_params (padded/transposed/cast weights)."""
    B, in_size = x.shape
    hp = prepared["w2"].shape[0]       # padded hidden width
    op = prepared["w4"].shape[1]       # padded output width (multiple of 128)
    cdt = prepared["w1"].dtype

    tile = batch_tile if batch_tile is not None else _default_batch_tile(B)
    grid = (pl.cdiv(B, tile),)

    x = x.astype(cdt)                  # halves streamed-x DMA bytes when bf16

    def x_map(i):
        return (i, 0)

    def const_map(i):
        return (0, 0)

    def w_spec(shape):
        # Constant block index -> single buffer, no double-buffer rotation.
        return pl.BlockSpec(shape, const_map, pipeline_mode=pl.Buffered(1))

    out_padded = pl.pallas_call(
        _mlp_kernel,
        out_shape=jax.ShapeDtypeStruct((B, op), jnp.float32),
        grid_spec=pltpu.PrefetchScalarGridSpec(
            num_scalar_prefetch=0,
            grid=grid,
            in_specs=[
                pl.BlockSpec((tile, in_size), x_map),   # x tile (streamed)
                w_spec((in_size, hp)),                  # W1
                w_spec((1, hp)),                        # b1
                w_spec((hp, hp)),                       # W2
                w_spec((1, hp)),                        # b2
                w_spec((hp, hp)),                       # W3
                w_spec((1, hp)),                        # b3
                w_spec((hp, op)),                       # W4
                w_spec((1, op)),                        # b4
            ],
            out_specs=pl.BlockSpec((tile, op), x_map),  # lane-dense stores
        ),
        compiler_params=pltpu.CompilerParams(
            dimension_semantics=("parallel",),
        ),
    )(x, prepared["w1"], prepared["b1"], prepared["w2"], prepared["b2"],
      prepared["w3"], prepared["b3"], prepared["w4"], prepared["b4"])

    return out_padded[:, :out_size]


def _reference_forward(x, params):
    h = jax.nn.relu(x @ params["w1"].T + params["b1"])
    h = jax.nn.relu(h @ params["w2"].T + params["b2"])
    h = jax.nn.relu(h @ params["w3"].T + params["b3"])
    return jax.nn.relu(h @ params["w4"].T + params["b4"])


def init_params(key, input_size, output_size, hidden_size):
    """Deterministic init matching nn.Linear shapes: W (out, in), b (out,)."""
    ks = jax.random.split(key, 8)
    scale = 0.1
    return {
        "w1": scale * jax.random.normal(ks[0], (hidden_size, input_size), jnp.float32),
        "b1": scale * jax.random.normal(ks[1], (hidden_size,), jnp.float32),
        "w2": scale * jax.random.normal(ks[2], (hidden_size, hidden_size), jnp.float32),
        "b2": scale * jax.random.normal(ks[3], (hidden_size,), jnp.float32),
        "w3": scale * jax.random.normal(ks[4], (hidden_size, hidden_size), jnp.float32),
        "b3": scale * jax.random.normal(ks[5], (hidden_size,), jnp.float32),
        "w4": scale * jax.random.normal(ks[6], (output_size, hidden_size), jnp.float32),
        "b4": scale * jax.random.normal(ks[7], (output_size,), jnp.float32),
    }


if __name__ == "__main__":
    # keno-like shapes: 80 numbers in, 80 scores out, hidden 32.
    batch, input_size, hidden_size, output_size = 8, 80, 32, 80

    key = jax.random.PRNGKey(0)
    kx, kp, kx2 = jax.random.split(key, 3)
    x = jax.random.normal(kx, (batch, input_size), jnp.float32)
    params = init_params(kp, input_size, output_size, hidden_size)

    ref = _reference_forward(x, params)

    # Exact-precision path (f32 weights): padding is numerically exact.
    prep_f32 = prepare_params(params, compute_dtype=jnp.float32)
    out_f32 = jax.block_until_ready(mlp_forward(x, prep_f32, out_size=output_size))
    assert out_f32.shape == (batch, output_size)
    assert jnp.allclose(out_f32, ref, atol=1e-4, rtol=1e-4), "f32 path mismatch"

    # Default fast path: bf16 MXU inputs, f32 accumulation.
    prep_bf16 = prepare_params(params)  # bfloat16 weights
    out_bf16 = jax.block_until_ready(mlp_forward(x, prep_bf16, out_size=output_size))
    assert out_bf16.shape == (batch, output_size)
    assert jnp.allclose(out_bf16, ref, atol=5e-2, rtol=5e-2), "bf16 path mismatch"

    # Larger batch exercising the auto batch-tile heuristic and a multi-step
    # 'parallel' grid (2 steps -> both TensorCores on v7x).
    xb = jax.random.normal(kx2, (256, input_size), jnp.float32)
    refb = _reference_forward(xb, params)
    outb = jax.block_until_ready(mlp_forward(xb, prep_bf16, out_size=output_size))
    assert outb.shape == (256, output_size)
    assert jnp.allclose(outb, refb, atol=5e-2, rtol=5e-2), "batched mismatch"

    # TODO(synk): loss()/accuracy() use numpy argsort + host-side python loops;
    # not part of the forward hot path, left unimplemented.
    print("KERNEL_OK")
</pallas_src>

<mosaic_0001>
module attributes {stable_mosaic.version = 11 : i64} {
  func.func @_mlp_kernel(%arg0: i32, %arg1: memref<8x80xf32, #tpu.memory_space<vmem>>, %arg2: memref<80x128xf32, #tpu.memory_space<vmem>>, %arg3: memref<1x128xf32, #tpu.memory_space<vmem>>, %arg4: memref<128x128xf32, #tpu.memory_space<vmem>>, %arg5: memref<1x128xf32, #tpu.memory_space<vmem>>, %arg6: memref<128x128xf32, #tpu.memory_space<vmem>>, %arg7: memref<1x128xf32, #tpu.memory_space<vmem>>, %arg8: memref<128x128xf32, #tpu.memory_space<vmem>>, %arg9: memref<1x128xf32, #tpu.memory_space<vmem>>, %arg10: memref<8x128xf32, #tpu.memory_space<vmem>>) attributes {dimension_semantics = [#tpu.dimension_semantics<parallel>], iteration_bounds = array<i64: 1>, scalar_prefetch = 0 : i64, scratch_operands = 0 : i64, tpu.core_type = #tpu.core_type<tc>, window_params = [{transform_indices = @transform_0, window_bounds = array<i64: 8, 80>}, {pipeline_mode = #tpu.pipeline_mode<synchronous>, transform_indices = @transform_1, window_bounds = array<i64: 80, 128>}, {pipeline_mode = #tpu.pipeline_mode<synchronous>, transform_indices = @transform_2, window_bounds = array<i64: 1, 128>}, {pipeline_mode = #tpu.pipeline_mode<synchronous>, transform_indices = @transform_3, window_bounds = array<i64: 128, 128>}, {pipeline_mode = #tpu.pipeline_mode<synchronous>, transform_indices = @transform_4, window_bounds = array<i64: 1, 128>}, {pipeline_mode = #tpu.pipeline_mode<synchronous>, transform_indices = @transform_5, window_bounds = array<i64: 128, 128>}, {pipeline_mode = #tpu.pipeline_mode<synchronous>, transform_indices = @transform_6, window_bounds = array<i64: 1, 128>}, {pipeline_mode = #tpu.pipeline_mode<synchronous>, transform_indices = @transform_7, window_bounds = array<i64: 128, 128>}, {pipeline_mode = #tpu.pipeline_mode<synchronous>, transform_indices = @transform_8, window_bounds = array<i64: 1, 128>}, {transform_indices = @transform_9, window_bounds = array<i64: 8, 128>}]} {
    %c0 = arith.constant 0 : index
    %c0_0 = arith.constant 0 : index
    %0 = vector.load %arg1[%c0, %c0_0] : memref<8x80xf32, #tpu.memory_space<vmem>>, vector<8x80xf32>
    %c0_1 = arith.constant 0 : index
    %c0_2 = arith.constant 0 : index
    %1 = vector.load %arg2[%c0_1, %c0_2] : memref<80x128xf32, #tpu.memory_space<vmem>>, vector<80x128xf32>
    %cst = arith.constant dense<0.000000e+00> : vector<8x128xf32>
    %2 = tpu.matmul %0, %1, %cst {dimension_numbers = #tpu.dot_dimension_numbers<[1], [0], [0], [1], [0, 0, 1, 1], [], []>} : vector<8x80xf32>, vector<80x128xf32>, vector<8x128xf32> -> vector<8x128xf32>
    %c0_3 = arith.constant 0 : index
    %c0_4 = arith.constant 0 : index
    %3 = vector.load %arg3[%c0_3, %c0_4] : memref<1x128xf32, #tpu.memory_space<vmem>>, vector<1x128xf32>
    %4 = vector.broadcast %3 : vector<1x128xf32> to vector<8x128xf32>
    %5 = arith.addf %2, %4 : vector<8x128xf32>
    %cst_5 = arith.constant 0.000000e+00 : f32
    %6 = vector.broadcast %cst_5 : f32 to vector<8x128xf32>
    %7 = arith.maximumf %5, %6 : vector<8x128xf32>
    %c0_6 = arith.constant 0 : index
    %c0_7 = arith.constant 0 : index
    %8 = vector.load %arg4[%c0_6, %c0_7] : memref<128x128xf32, #tpu.memory_space<vmem>>, vector<128x128xf32>
    %cst_8 = arith.constant dense<0.000000e+00> : vector<8x128xf32>
    %9 = tpu.matmul %7, %8, %cst_8 {dimension_numbers = #tpu.dot_dimension_numbers<[1], [0], [0], [1], [0, 0, 1, 1], [], []>} : vector<8x128xf32>, vector<128x128xf32>, vector<8x128xf32> -> vector<8x128xf32>
    %c0_9 = arith.constant 0 : index
    %c0_10 = arith.constant 0 : index
    %10 = vector.load %arg5[%c0_9, %c0_10] : memref<1x128xf32, #tpu.memory_space<vmem>>, vector<1x128xf32>
    %11 = vector.broadcast %10 : vector<1x128xf32> to vector<8x128xf32>
    %12 = arith.addf %9, %11 : vector<8x128xf32>
    %cst_11 = arith.constant 0.000000e+00 : f32
    %13 = vector.broadcast %cst_11 : f32 to vector<8x128xf32>
    %14 = arith.maximumf %12, %13 : vector<8x128xf32>
    %c0_12 = arith.constant 0 : index
    %c0_13 = arith.constant 0 : index
    %15 = vector.load %arg6[%c0_12, %c0_13] : memref<128x128xf32, #tpu.memory_space<vmem>>, vector<128x128xf32>
    %cst_14 = arith.constant dense<0.000000e+00> : vector<8x128xf32>
    %16 = tpu.matmul %14, %15, %cst_14 {dimension_numbers = #tpu.dot_dimension_numbers<[1], [0], [0], [1], [0, 0, 1, 1], [], []>} : vector<8x128xf32>, vector<128x128xf32>, vector<8x128xf32> -> vector<8x128xf32>
    %c0_15 = arith.constant 0 : index
    %c0_16 = arith.constant 0 : index
    %17 = vector.load %arg7[%c0_15, %c0_16] : memref<1x128xf32, #tpu.memory_space<vmem>>, vector<1x128xf32>
    %18 = vector.broadcast %17 : vector<1x128xf32> to vector<8x128xf32>
    %19 = arith.addf %16, %18 : vector<8x128xf32>
    %cst_17 = arith.constant 0.000000e+00 : f32
    %20 = vector.broadcast %cst_17 : f32 to vector<8x128xf32>
    %21 = arith.maximumf %19, %20 : vector<8x128xf32>
    %c0_18 = arith.constant 0 : index
    %c0_19 = arith.constant 0 : index
    %22 = vector.load %arg8[%c0_18, %c0_19] : memref<128x128xf32, #tpu.memory_space<vmem>>, vector<128x128xf32>
    %cst_20 = arith.constant dense<0.000000e+00> : vector<8x128xf32>
    %23 = tpu.matmul %21, %22, %cst_20 {dimension_numbers = #tpu.dot_dimension_numbers<[1], [0], [0], [1], [0, 0, 1, 1], [], []>} : vector<8x128xf32>, vector<128x128xf32>, vector<8x128xf32> -> vector<8x128xf32>
    %c0_21 = arith.constant 0 : index
    %c0_22 = arith.constant 0 : index
    %24 = vector.load %arg9[%c0_21, %c0_22] : memref<1x128xf32, #tpu.memory_space<vmem>>, vector<1x128xf32>
    %25 = vector.broadcast %24 : vector<1x128xf32> to vector<8x128xf32>
    %26 = arith.addf %23, %25 : vector<8x128xf32>
    %cst_23 = arith.constant 0.000000e+00 : f32
    %27 = vector.broadcast %cst_23 : f32 to vector<8x128xf32>
    %28 = arith.maximumf %26, %27 : vector<8x128xf32>
    %c0_24 = arith.constant 0 : index
    %c0_25 = arith.constant 0 : index
    %29 = vector.load %arg10[%c0_24, %c0_25] : memref<8x128xf32, #tpu.memory_space<vmem>>, vector<8x128xf32>
    tpu.vector_store %arg10[%c0_24, %c0_25], %28 {strides = array<i32>} : memref<8x128xf32, #tpu.memory_space<vmem>>, vector<8x128xf32>,
    return
  }
  func.func @transform_0(%arg0: i32) -> (i32, i32) {
    %c0_i32 = arith.constant 0 : i32
    %c0_i32_0 = arith.constant 0 : i32
    return %arg0, %c0_i32 : i32, i32
  }
  func.func @transform_1(%arg0: i32) -> (i32, i32) {
    %c0_i32 = arith.constant 0 : i32
    %c0_i32_0 = arith.constant 0 : i32
    %c0_i32_1 = arith.constant 0 : i32
    return %c0_i32, %c0_i32_0 : i32, i32
  }
  func.func @transform_2(%arg0: i32) -> (i32, i32) {
    %c0_i32 = arith.constant 0 : i32
    %c0_i32_0 = arith.constant 0 : i32
    %c0_i32_1 = arith.constant 0 : i32
    return %c0_i32, %c0_i32_0 : i32, i32
  }
  func.func @transform_3(%arg0: i32) -> (i32, i32) {
    %c0_i32 = arith.constant 0 : i32
    %c0_i32_0 = arith.constant 0 : i32
    %c0_i32_1 = arith.constant 0 : i32
    return %c0_i32, %c0_i32_0 : i32, i32
  }
  func.func @transform_4(%arg0: i32) -> (i32, i32) {
    %c0_i32 = arith.constant 0 : i32
    %c0_i32_0 = arith.constant 0 : i32
    %c0_i32_1 = arith.constant 0 : i32
    return %c0_i32, %c0_i32_0 : i32, i32
  }
  func.func @transform_5(%arg0: i32) -> (i32, i32) {
    %c0_i32 = arith.constant 0 : i32
    %c0_i32_0 = arith.constant 0 : i32
    %c0_i32_1 = arith.constant 0 : i32
    return %c0_i32, %c0_i32_0 : i32, i32
  }
  func.func @transform_6(%arg0: i32) -> (i32, i32) {
    %c0_i32 = arith.constant 0 : i32
    %c0_i32_0 = arith.constant 0 : i32
    %c0_i32_1 = arith.constant 0 : i32
    return %c0_i32, %c0_i32_0 : i32, i32
  }
  func.func @transform_7(%arg0: i32) -> (i32, i32) {
    %c0_i32 = arith.constant 0 : i32
    %c0_i32_0 = arith.constant 0 : i32
    %c0_i32_1 = arith.constant 0 : i32
    return %c0_i32, %c0_i32_0 : i32, i32
  }
  func.func @transform_8(%arg0: i32) -> (i32, i32) {
    %c0_i32 = arith.constant 0 : i32
    %c0_i32_0 = arith.constant 0 : i32
    %c0_i32_1 = arith.constant 0 : i32
    return %c0_i32, %c0_i32_0 : i32, i32
  }
  func.func @transform_9(%arg0: i32) -> (i32, i32) {
    %c0_i32 = arith.constant 0 : i32
    %c0_i32_0 = arith.constant 0 : i32
    return %arg0, %c0_i32 : i32, i32
  }
}

</mosaic_0001>

<llo_original>
// kernel: mlp_forward.1
$region0: #{mlp_forward.1}
  #allocation0 [shape = 'u32[]', space=smem, size = 0x4, offset = 0x4, fixed_abs, tag = 'smem constant byte address 0x4 - core index']
  #allocation1 [shape = 'u32[144,128]{1,0:T(1,128)}', space=vmem, size = 0x12000, scoped, tag = 'internal scratch']
  %s0 = inlined_call_operand.hbm [shape: f32[8,80], index: 0, kind: input, shape index: {}]
  %s1 = inlined_call_operand.hbm [shape: f32[80,128], index: 1, kind: input, shape index: {}]
  %s2 = inlined_call_operand.vmem [shape: f32[1,128], index: 2, kind: input, shape index: {}]
  %s3 = inlined_call_operand.hbm [shape: f32[128,128], index: 3, kind: input, shape index: {}]
  %s4 = inlined_call_operand.vmem [shape: f32[1,128], index: 4, kind: input, shape index: {}]
  %s5 = inlined_call_operand.hbm [shape: f32[128,128], index: 5, kind: input, shape index: {}]
  %s6 = inlined_call_operand.vmem [shape: f32[1,128], index: 6, kind: input, shape index: {}]
  %s7 = inlined_call_operand.hbm [shape: f32[128,128], index: 7, kind: input, shape index: {}]
  %s8 = inlined_call_operand.vmem [shape: f32[1,128], index: 8, kind: input, shape index: {}]
  %s9 = inlined_call_operand.hbm [shape: f32[8,128], index: 9, kind: output, shape index: {}]
  %s10 = sld [smem:[#allocation0]]
  $region66: #{mlp_forward.1} parent=0
    _
  %s12 = ssub.s32 1, %s10
  %s13 = scalar_select 0, %s12, %s10
  $region1: #{mlp_forward.1} parent=0
    #allocation2 [shape = 'u8[4096]{0}', space=vmem, size = 0x1000, scoped, tag = 'input window, operand 0, single buffered']
    #allocation3 [shape = 's32[1]{0}', space=sflag, size = 0x4, scoped, tag = 'scoped memory for mlp_forward.1']
    #allocation4 [shape = 's32[1]{0}', space=sflag, size = 0x4, scoped, tag = 'scoped memory for mlp_forward.1']
    #allocation5 [shape = 'u8[40960]{0}', space=vmem, size = 0xa000, scoped, tag = 'input window, operand 1, single buffered']
    #allocation6 [shape = 's32[1]{0}', space=sflag, size = 0x4, scoped, tag = 'scoped memory for mlp_forward.1']
    #allocation7 [shape = 'u8[65536]{0}', space=vmem, size = 0x10000, scoped, tag = 'input window, operand 3, single buffered']
    #allocation8 [shape = 'u8[65536]{0}', space=vmem, size = 0x10000, scoped, tag = 'input window, operand 5, single buffered']
    #allocation9 [shape = 's32[1]{0}', space=sflag, size = 0x4, scoped, tag = 'scoped memory for mlp_forward.1']
    #allocation10 [shape = 'u8[65536]{0}', space=vmem, size = 0x10000, scoped, tag = 'input window, operand 7, single buffered']
    #allocation11 [shape = 'u8[4096]{0}', space=vmem, size = 0x1000, scoped, tag = 'output window, operand 0, single buffered']
    %14 = vsyncpa [#allocation3], 0
    %15 = vsyncpa [#allocation6], 0
    %16 = vsyncpa [#allocation9], 0
    %17 = vsyncpa [#allocation4], 0
    // Predicated region
    $region2: #{mlp_forward.1} parent=1 // pred_check
      _
    $region3: #{mlp_forward.1} parent=1 // pred_check_branch
      %19 = sbr.rel (0) target = $region5
    $region4: #{mlp_forward.1} parent=1 // pred_region
      %s21 = ssub.s32 128, 128
      %22 = vsyncadd [#allocation3], %s21
      %s24 = sshll.u32 [#allocation2], 4
      %s25 = int_to_ptr.vmem [resolvable:$true] %s24
      %27 = dma.hbm_to_vmem [thread:$0]  %s0, 128, %s25, [#allocation3]
    $region5: #{mlp_forward.1} parent=1 // pred_fallthru
      _
    // Predicated region
    $region6: #{mlp_forward.1} parent=1 // pred_check
      _
    $region7: #{mlp_forward.1} parent=1 // pred_check_branch
      %29 = sbr.rel (0) target = $region9
    $region8: #{mlp_forward.1} parent=1 // pred_region
      %s31 = ssub.s32 1280, 1280
      %32 = vsyncadd [#allocation6], %s31
      %s33 = sshll.u32 [#allocation5], 4
      %s34 = int_to_ptr.vmem [resolvable:$true] %s33
      %39 = dma.hbm_to_vmem [thread:$0]  %s1, 1280, %s34, [#allocation6], 128, 128, 8
    $region9: #{mlp_forward.1} parent=1 // pred_fallthru
      _
    // Predicated region
    $region10: #{mlp_forward.1} parent=1 // pred_check
      _
    $region11: #{mlp_forward.1} parent=1 // pred_check_branch
      %41 = sbr.rel (0) target = $region13
    $region12: #{mlp_forward.1} parent=1 // pred_region
      _
    $region13: #{mlp_forward.1} parent=1 // pred_fallthru
      _
    // Predicated region
    $region14: #{mlp_forward.1} parent=1 // pred_check
      _
    $region15: #{mlp_forward.1} parent=1 // pred_check_branch
      %43 = sbr.rel (0) target = $region17
    $region16: #{mlp_forward.1} parent=1 // pred_region
      %s45 = ssub.s32 2048, 2048
      %46 = vsyncadd [#allocation6], %s45
      %s47 = sshll.u32 [#allocation7], 4
      %s48 = int_to_ptr.vmem [resolvable:$true] %s47
      %53 = dma.hbm_to_vmem [thread:$0]  %s3, 2048, %s48, [#allocation6], 128, 128, 8
    $region17: #{mlp_forward.1} parent=1 // pred_fallthru
      _
    // Predicated region
    $region18: #{mlp_forward.1} parent=1 // pred_check
      _
    $region19: #{mlp_forward.1} parent=1 // pred_check_branch
      %55 = sbr.rel (0) target = $region21
    $region20: #{mlp_forward.1} parent=1 // pred_region
      _
    $region21: #{mlp_forward.1} parent=1 // pred_fallthru
      _
    // Predicated region
    $region22: #{mlp_forward.1} parent=1 // pred_check
      _
    $region23: #{mlp_forward.1} parent=1 // pred_check_branch
      %57 = sbr.rel (0) target = $region25
    $region24: #{mlp_forward.1} parent=1 // pred_region
      %s59 = ssub.s32 2048, 2048
      %60 = vsyncadd [#allocation9], %s59
      %s61 = sshll.u32 [#allocation8], 4
      %s62 = int_to_ptr.vmem [resolvable:$true] %s61
      %67 = dma.hbm_to_vmem [thread:$0]  %s5, 2048, %s62, [#allocation9], 128, 128, 8
    $region25: #{mlp_forward.1} parent=1 // pred_fallthru
      _
    // Predicated region
    $region26: #{mlp_forward.1} parent=1 // pred_check
      _
    $region27: #{mlp_forward.1} parent=1 // pred_check_branch
      %69 = sbr.rel (0) target = $region29
    $region28: #{mlp_forward.1} parent=1 // pred_region
      _
    $region29: #{mlp_forward.1} parent=1 // pred_fallthru
      _
    // Predicated region
    $region30: #{mlp_forward.1} parent=1 // pred_check
      _
    $region31: #{mlp_forward.1} parent=1 // pred_check_branch
      %71 = sbr.rel (0) target = $region33
    $region32: #{mlp_forward.1} parent=1 // pred_region
      %s73 = ssub.s32 2048, 2048
      %74 = vsyncadd [#allocation9], %s73
      %s75 = sshll.u32 [#allocation10], 4
      %s76 = int_to_ptr.vmem [resolvable:$true] %s75
      %81 = dma.hbm_to_vmem [thread:$0]  %s7, 2048, %s76, [#allocation9], 128, 128, 8
    $region33: #{mlp_forward.1} parent=1 // pred_fallthru
      _
    // Predicated region
    $region34: #{mlp_forward.1} parent=1 // pred_check
      _
    $region35: #{mlp_forward.1} parent=1 // pred_check_branch
      %83 = sbr.rel (0) target = $region37
    $region36: #{mlp_forward.1} parent=1 // pred_region
      _
    $region37: #{mlp_forward.1} parent=1 // pred_fallthru
      _
    // Predicated region
    $region38: #{mlp_forward.1} parent=1 // pred_check
      _
    $region39: #{mlp_forward.1} parent=1 // pred_check_branch
      %85 = sbr.rel (0) target = $region41
    $region40: #{mlp_forward.1} parent=1 // pred_region
      %86 = dma.done [#allocation3], 128
    $region41: #{mlp_forward.1} parent=1 // pred_fallthru
      _
    // Predicated region
    $region42: #{mlp_forward.1} parent=1 // pred_check
      _
    $region43: #{mlp_forward.1} parent=1 // pred_check_branch
      %88 = sbr.rel (0) target = $region45
    $region44: #{mlp_forward.1} parent=1 // pred_region
      %89 = dma.done [#allocation6], 1280
    $region45: #{mlp_forward.1} parent=1 // pred_fallthru
      _
    // Predicated region
    $region46: #{mlp_forward.1} parent=1 // pred_check
      _
    $region47: #{mlp_forward.1} parent=1 // pred_check_branch
      %91 = sbr.rel (0) target = $region49
    $region48: #{mlp_forward.1} parent=1 // pred_region
      %92 = dma.done [#allocation6], 2048
    $region49: #{mlp_forward.1} parent=1 // pred_fallthru
      _
    // Predicated region
    $region50: #{mlp_forward.1} parent=1 // pred_check
      _
    $region51: #{mlp_forward.1} parent=1 // pred_check_branch
      %94 = sbr.rel (0) target = $region53
    $region52: #{mlp_forward.1} parent=1 // pred_region
      %95 = dma.done [#allocation9], 2048
    $region53: #{mlp_forward.1} parent=1 // pred_fallthru
      _
    // Predicated region
    $region54: #{mlp_forward.1} parent=1 // pred_check
      _
    $region55: #{mlp_forward.1} parent=1 // pred_check_branch
      %97 = sbr.rel (0) target = $region57
    $region56: #{mlp_forward.1} parent=1 // pred_region
      %98 = dma.done [#allocation9], 2048
    $region57: #{mlp_forward.1} parent=1 // pred_fallthru
      _
    %v99 = vld [vmem:[#allocation2] sm:$0xff]
    %v100 = vld [vmem:[#allocation5] sm:$0xff]
    %v101 = vld [vmem:[#allocation5 + $0x8] sm:$0xff]
    %v102 = vld [vmem:[#allocation5 + $0x10] sm:$0xff]
    %v103 = vld [vmem:[#allocation5 + $0x18] sm:$0xff]
    %v104 = vld [vmem:[#allocation5 + $0x20] sm:$0xff]
    %v105 = vld [vmem:[#allocation5 + $0x28] sm:$0xff]
    %v106 = vld [vmem:[#allocation5 + $0x30] sm:$0xff]
    %v107 = vld [vmem:[#allocation5 + $0x38] sm:$0xff]
    %v108 = vld [vmem:[#allocation5 + $0x40] sm:$0xff]
    %v109 = vld [vmem:[#allocation5 + $0x48] sm:$0xff]
    %v110 = vld [vmem:[%s2] sm:$0x1]
    %v112 = vlaneseq
    %v113 = vshrl.u32 %v112, 7
    %v114 = vsub.s32 0, %v113
    %v115 = vrot.slane %v110, %v114
    %vm117 = vcmask 654336
    %v119 = vsel %vm117, %v99, 0
    %121 = vmatprep.subr.mxu0 0.0
    %122 = vmatpush1.msra.mxu0 %v100
    %123 = vmatprep.subr.mxu0 0.0
    %124 = vmatpush1.msra.mxu0 %v101
    %125 = vmatprep.subr.mxu0 0.0
    %126 = vmatpush1.msra.mxu0 %v102
    %127 = vmatprep.subr.mxu0 0.0
    %128 = vmatpush1.msra.mxu0 %v103
    %129 = vmatprep.subr.mxu0 0.0
    %130 = vmatpush1.msra.mxu0 %v104
    %131 = vmatprep.subr.mxu0 0.0
    %132 = vmatpush1.msra.mxu0 %v105
    %133 = vmatprep.subr.mxu0 0.0
    %134 = vmatpush1.msra.mxu0 %v106
    %135 = vmatprep.subr.mxu0 0.0
    %136 = vmatpush1.msra.mxu0 %v107
    %137 = vmatprep.subr.mxu0 0.0
    %138 = vmatpush1.msra.mxu0 %v108
    %139 = vmatprep.subr.mxu0 0.0
    %140 = vmatpush1.msra.mxu0 %v109
    %141 = vmatprep.subr.mxu0 0.0
    %142 = vmatpush1.msra.mxu0 0.0
    %143 = vmatprep.subr.mxu0 0.0
    %144 = vmatpush1.msra.mxu0 0.0
    %145 = vmatprep.subr.mxu0 0.0
    %146 = vmatpush1.msra.mxu0 0.0
    %147 = vmatprep.subr.mxu0 0.0
    %148 = vmatpush1.msra.mxu0 0.0
    %149 = vmatprep.subr.mxu0 0.0
    %150 = vmatpush1.msra.mxu0 0.0
    %151 = vmatprep.subr.mxu0 0.0
    %152 = vmatpush1.msra.mxu0 0.0
    %153 = vmatprep.subr.mxu0 0.0
    %154 = vmatpush1.msra.mxu0 0.0
    %155 = vmatprep.subr.mxu0 0.0
    %156 = vmatpush1.msra.mxu0 0.0
    %157 = vmatprep.subr.mxu0 0.0
    %158 = vmatpush1.msra.mxu0 0.0
    %159 = vmatprep.subr.mxu0 0.0
    %160 = vmatpush1.msra.mxu0 0.0
    %161 = vmatprep.subr.mxu0 0.0
    %162 = vmatpush1.msra.mxu0 0.0
    %163 = vmatprep.subr.mxu0 0.0
    %164 = vmatpush1.msra.mxu0 0.0
    %165 = vmatprep.subr.mxu0 0.0
    %166 = vmatpush1.msra.mxu0 0.0
    %167 = vmatprep.subr.mxu0 0.0
    %168 = vmatpush1.msra.mxu0 0.0
    %169 = vmatprep.subr.mxu0 0.0
    %170 = vmatpush1.msra.mxu0 0.0
    %171 = vmatprep.subr.mxu0 0.0
    %172 = vmatpush1.msra.mxu0 0.0
    %173 = vmatprep.subr.mxu0 0.0
    %174 = vmatpush1.msra.mxu0 0.0
    %175 = vmatprep.subr.mxu0 0.0
    %176 = vmatpush1.msra.mxu0 0.0
    %177 = vmatprep.subr.mxu0 0.0
    %178 = vmatpush1.msra.mxu0 0.0
    %179 = vmatprep.subr.mxu0 0.0
    %180 = vmatpush1.msra.mxu0 0.0
    %181 = vmatprep.subr.mxu0 0.0
    %182 = vmatpush1.msra.mxu0 0.0
    %183 = vmatprep.subr.mxu0 0.0
    %184 = vmatpush1.msra.mxu0 0.0
    %185 = vmatprep.mubr.f32.mxu0 0.0
    %186 = vmatmul.mubr.f32.gmra.mrb[0].mxu0 %v119
    %v187 = vpop.f32.mrb[0].mxu0
    %v188 = vadd.f32 %v115, %v187
    %v189 = vpop.f32.mrb[0].mxu0
    %190 = vdwg.mxu0
    %v191 = vmax.f32 %v188, 0.0
    %v192 = vld [vmem:[#allocation7] sm:$0xff]
    %v193 = vld [vmem:[#allocation7 + $0x8] sm:$0xff]
    %v194 = vld [vmem:[#allocation7 + $0x10] sm:$0xff]
    %v195 = vld [vmem:[#allocation7 + $0x18] sm:$0xff]
    %v196 = vld [vmem:[#allocation7 + $0x20] sm:$0xff]
    %v197 = vld [vmem:[#allocation7 + $0x28] sm:$0xff]
    %v198 = vld [vmem:[#allocation7 + $0x30] sm:$0xff]
    %v199 = vld [vmem:[#allocation7 + $0x38] sm:$0xff]
    %v200 = vld [vmem:[#allocation7 + $0x40] sm:$0xff]
    %v201 = vld [vmem:[#allocation7 + $0x48] sm:$0xff]
    %v202 = vld [vmem:[#allocation7 + $0x50] sm:$0xff]
    %v203 = vld [vmem:[#allocation7 + $0x58] sm:$0xff]
    %v204 = vld [vmem:[#allocation7 + $0x60] sm:$0xff]
    %v205 = vld [vmem:[#allocation7 + $0x68] sm:$0xff]
    %v206 = vld [vmem:[#allocation7 + $0x70] sm:$0xff]
    %v207 = vld [vmem:[#allocation7 + $0x78] sm:$0xff]
    %v208 = vld [vmem:[%s4] sm:$0x1]
    %v210 = vlaneseq
    %v211 = vshrl.u32 %v210, 7
    %v212 = vsub.s32 0, %v211
    %v213 = vrot.slane %v208, %v212
    %215 = vmatprep.subr.mxu0 0.0
    %216 = vmatpush1.msra.mxu0 %v192
    %217 = vmatprep.subr.mxu0 0.0
    %218 = vmatpush1.msra.mxu0 %v193
    %219 = vmatprep.subr.mxu0 0.0
    %220 = vmatpush1.msra.mxu0 %v194
    %221 = vmatprep.subr.mxu0 0.0
    %222 = vmatpush1.msra.mxu0 %v195
    %223 = vmatprep.subr.mxu0 0.0
    %224 = vmatpush1.msra.mxu0 %v196
    %225 = vmatprep.subr.mxu0 0.0
    %226 = vmatpush1.msra.mxu0 %v197
    %227 = vmatprep.subr.mxu0 0.0
    %228 = vmatpush1.msra.mxu0 %v198
    %229 = vmatprep.subr.mxu0 0.0
    %230 = vmatpush1.msra.mxu0 %v199
    %231 = vmatprep.subr.mxu0 0.0
    %232 = vmatpush1.msra.mxu0 %v200
    %233 = vmatprep.subr.mxu0 0.0
    %234 = vmatpush1.msra.mxu0 %v201
    %235 = vmatprep.subr.mxu0 0.0
    %236 = vmatpush1.msra.mxu0 %v202
    %237 = vmatprep.subr.mxu0 0.0
    %238 = vmatpush1.msra.mxu0 %v203
    %239 = vmatprep.subr.mxu0 0.0
    %240 = vmatpush1.msra.mxu0 %v204
    %241 = vmatprep.subr.mxu0 0.0
    %242 = vmatpush1.msra.mxu0 %v205
    %243 = vmatprep.subr.mxu0 0.0
    %244 = vmatpush1.msra.mxu0 %v206
    %245 = vmatprep.subr.mxu0 0.0
    %246 = vmatpush1.msra.mxu0 %v207
    %247 = vmatprep.subr.mxu0 0.0
    %248 = vmatpush1.msra.mxu0 0.0
    %249 = vmatprep.subr.mxu0 0.0
    %250 = vmatpush1.msra.mxu0 0.0
    %251 = vmatprep.subr.mxu0 0.0
    %252 = vmatpush1.msra.mxu0 0.0
    %253 = vmatprep.subr.mxu0 0.0
    %254 = vmatpush1.msra.mxu0 0.0
    %255 = vmatprep.subr.mxu0 0.0
    %256 = vmatpush1.msra.mxu0 0.0
    %257 = vmatprep.subr.mxu0 0.0
    %258 = vmatpush1.msra.mxu0 0.0
    %259 = vmatprep.subr.mxu0 0.0
    %260 = vmatpush1.msra.mxu0 0.0
    %261 = vmatprep.subr.mxu0 0.0
    %262 = vmatpush1.msra.mxu0 0.0
    %263 = vmatprep.subr.mxu0 0.0
    %264 = vmatpush1.msra.mxu0 0.0
    %265 = vmatprep.subr.mxu0 0.0
    %266 = vmatpush1.msra.mxu0 0.0
    %267 = vmatprep.subr.mxu0 0.0
    %268 = vmatpush1.msra.mxu0 0.0
    %269 = vmatprep.subr.mxu0 0.0
    %270 = vmatpush1.msra.mxu0 0.0
    %271 = vmatprep.subr.mxu0 0.0
    %272 = vmatpush1.msra.mxu0 0.0
    %273 = vmatprep.subr.mxu0 0.0
    %274 = vmatpush1.msra.mxu0 0.0
    %275 = vmatprep.subr.mxu0 0.0
    %276 = vmatpush1.msra.mxu0 0.0
    %277 = vmatprep.subr.mxu0 0.0
    %278 = vmatpush1.msra.mxu0 0.0
    %279 = vmatprep.mubr.f32.mxu0 0.0
    %280 = vmatmul.mubr.f32.gmra.mrb[0].mxu0 %v191
    %v281 = vpop.f32.mrb[0].mxu0
    %v282 = vadd.f32 %v213, %v281
    %v283 = vpop.f32.mrb[0].mxu0
    %284 = vdwg.mxu0
    %v285 = vmax.f32 %v282, 0.0
    %v286 = vld [vmem:[#allocation8] sm:$0xff]
    %v287 = vld [vmem:[#allocation8 + $0x8] sm:$0xff]
    %v288 = vld [vmem:[#allocation8 + $0x10] sm:$0xff]
    %v289 = vld [vmem:[#allocation8 + $0x18] sm:$0xff]
    %v290 = vld [vmem:[#allocation8 + $0x20] sm:$0xff]
    %v291 = vld [vmem:[#allocation8 + $0x28] sm:$0xff]
    %v292 = vld [vmem:[#allocation8 + $0x30] sm:$0xff]
    %v293 = vld [vmem:[#allocation8 + $0x38] sm:$0xff]
    %v294 = vld [vmem:[#allocation8 + $0x40] sm:$0xff]
    %v295 = vld [vmem:[#allocation8 + $0x48] sm:$0xff]
    %v296 = vld [vmem:[#allocation8 + $0x50] sm:$0xff]
    %v297 = vld [vmem:[#allocation8 + $0x58] sm:$0xff]
    %v298 = vld [vmem:[#allocation8 + $0x60] sm:$0xff]
    %v299 = vld [vmem:[#allocation8 + $0x68] sm:$0xff]
    %v300 = vld [vmem:[#allocation8 + $0x70] sm:$0xff]
    %v301 = vld [vmem:[#allocation8 + $0x78] sm:$0xff]
    %v302 = vld [vmem:[%s6] sm:$0x1]
    %v304 = vlaneseq
    %v305 = vshrl.u32 %v304, 7
    %v306 = vsub.s32 0, %v305
    %v307 = vrot.slane %v302, %v306
    %309 = vmatprep.subr.mxu0 0.0
    %310 = vmatpush1.msra.mxu0 %v286
    %311 = vmatprep.subr.mxu0 0.0
    %312 = vmatpush1.msra.mxu0 %v287
    %313 = vmatprep.subr.mxu0 0.0
    %314 = vmatpush1.msra.mxu0 %v288
    %315 = vmatprep.subr.mxu0 0.0
    %316 = vmatpush1.msra.mxu0 %v289
    %317 = vmatprep.subr.mxu0 0.0
    %318 = vmatpush1.msra.mxu0 %v290
    %319 = vmatprep.subr.mxu0 0.0
    %320 = vmatpush1.msra.mxu0 %v291
    %321 = vmatprep.subr.mxu0 0.0
    %322 = vmatpush1.msra.mxu0 %v292
    %323 = vmatprep.subr.mxu0 0.0
    %324 = vmatpush1.msra.mxu0 %v293
    %325 = vmatprep.subr.mxu0 0.0
    %326 = vmatpush1.msra.mxu0 %v294
    %327 = vmatprep.subr.mxu0 0.0
    %328 = vmatpush1.msra.mxu0 %v295
    %329 = vmatprep.subr.mxu0 0.0
    %330 = vmatpush1.msra.mxu0 %v296
    %331 = vmatprep.subr.mxu0 0.0
    %332 = vmatpush1.msra.mxu0 %v297
    %333 = vmatprep.subr.mxu0 0.0
    %334 = vmatpush1.msra.mxu0 %v298
    %335 = vmatprep.subr.mxu0 0.0
    %336 = vmatpush1.msra.mxu0 %v299
    %337 = vmatprep.subr.mxu0 0.0
    %338 = vmatpush1.msra.mxu0 %v300
    %339 = vmatprep.subr.mxu0 0.0
    %340 = vmatpush1.msra.mxu0 %v301
    %341 = vmatprep.subr.mxu0 0.0
    %342 = vmatpush1.msra.mxu0 0.0
    %343 = vmatprep.subr.mxu0 0.0
    %344 = vmatpush1.msra.mxu0 0.0
    %345 = vmatprep.subr.mxu0 0.0
    %346 = vmatpush1.msra.mxu0 0.0
    %347 = vmatprep.subr.mxu0 0.0
    %348 = vmatpush1.msra.mxu0 0.0
    %349 = vmatprep.subr.mxu0 0.0
    %350 = vmatpush1.msra.mxu0 0.0
    %351 = vmatprep.subr.mxu0 0.0
    %352 = vmatpush1.msra.mxu0 0.0
    %353 = vmatprep.subr.mxu0 0.0
    %354 = vmatpush1.msra.mxu0 0.0
    %355 = vmatprep.subr.mxu0 0.0
    %356 = vmatpush1.msra.mxu0 0.0
    %357 = vmatprep.subr.mxu0 0.0
    %358 = vmatpush1.msra.mxu0 0.0
    %359 = vmatprep.subr.mxu0 0.0
    %360 = vmatpush1.msra.mxu0 0.0
    %361 = vmatprep.subr.mxu0 0.0
    %362 = vmatpush1.msra.mxu0 0.0
    %363 = vmatprep.subr.mxu0 0.0
    %364 = vmatpush1.msra.mxu0 0.0
    %365 = vmatprep.subr.mxu0 0.0
    %366 = vmatpush1.msra.mxu0 0.0
    %367 = vmatprep.subr.mxu0 0.0
    %368 = vmatpush1.msra.mxu0 0.0
    %369 = vmatprep.subr.mxu0 0.0
    %370 = vmatpush1.msra.mxu0 0.0
    %371 = vmatprep.subr.mxu0 0.0
    %372 = vmatpush1.msra.mxu0 0.0
    %373 = vmatprep.mubr.f32.mxu0 0.0
    %374 = vmatmul.mubr.f32.gmra.mrb[0].mxu0 %v285
    %v375 = vpop.f32.mrb[0].mxu0
    %v376 = vadd.f32 %v307, %v375
    %v377 = vpop.f32.mrb[0].mxu0
    %378 = vdwg.mxu0
    %v379 = vmax.f32 %v376, 0.0
    %v380 = vld [vmem:[#allocation10] sm:$0xff]
    %v381 = vld [vmem:[#allocation10 + $0x8] sm:$0xff]
    %v382 = vld [vmem:[#allocation10 + $0x10] sm:$0xff]
    %v383 = vld [vmem:[#allocation10 + $0x18] sm:$0xff]
    %v384 = vld [vmem:[#allocation10 + $0x20] sm:$0xff]
    %v385 = vld [vmem:[#allocation10 + $0x28] sm:$0xff]
    %v386 = vld [vmem:[#allocation10 + $0x30] sm:$0xff]
    %v387 = vld [vmem:[#allocation10 + $0x38] sm:$0xff]
    %v388 = vld [vmem:[#allocation10 + $0x40] sm:$0xff]
    %v389 = vld [vmem:[#allocation10 + $0x48] sm:$0xff]
    %v390 = vld [vmem:[#allocation10 + $0x50] sm:$0xff]
    %v391 = vld [vmem:[#allocation10 + $0x58] sm:$0xff]
    %v392 = vld [vmem:[#allocation10 + $0x60] sm:$0xff]
    %v393 = vld [vmem:[#allocation10 + $0x68] sm:$0xff]
    %v394 = vld [vmem:[#allocation10 + $0x70] sm:$0xff]
    %v395 = vld [vmem:[#allocation10 + $0x78] sm:$0xff]
    %v396 = vld [vmem:[%s8] sm:$0x1]
    %v398 = vlaneseq
    %v399 = vshrl.u32 %v398, 7
    %v400 = vsub.s32 0, %v399
    %v401 = vrot.slane %v396, %v400
    %403 = vmatprep.subr.mxu0 0.0
    %404 = vmatpush1.msra.mxu0 %v380
    %405 = vmatprep.subr.mxu0 0.0
    %406 = vmatpush1.msra.mxu0 %v381
    %407 = vmatprep.subr.mxu0 0.0
    %408 = vmatpush1.msra.mxu0 %v382
    %409 = vmatprep.subr.mxu0 0.0
    %410 = vmatpush1.msra.mxu0 %v383
    %411 = vmatprep.subr.mxu0 0.0
    %412 = vmatpush1.msra.mxu0 %v384
    %413 = vmatprep.subr.mxu0 0.0
    %414 = vmatpush1.msra.mxu0 %v385
    %415 = vmatprep.subr.mxu0 0.0
    %416 = vmatpush1.msra.mxu0 %v386
    %417 = vmatprep.subr.mxu0 0.0
    %418 = vmatpush1.msra.mxu0 %v387
    %419 = vmatprep.subr.mxu0 0.0
    %420 = vmatpush1.msra.mxu0 %v388
    %421 = vmatprep.subr.mxu0 0.0
    %422 = vmatpush1.msra.mxu0 %v389
    %423 = vmatprep.subr.mxu0 0.0
    %424 = vmatpush1.msra.mxu0 %v390
    %425 = vmatprep.subr.mxu0 0.0
    %426 = vmatpush1.msra.mxu0 %v391
    %427 = vmatprep.subr.mxu0 0.0
    %428 = vmatpush1.msra.mxu0 %v392
    %429 = vmatprep.subr.mxu0 0.0
    %430 = vmatpush1.msra.mxu0 %v393
    %431 = vmatprep.subr.mxu0 0.0
    %432 = vmatpush1.msra.mxu0 %v394
    %433 = vmatprep.subr.mxu0 0.0
    %434 = vmatpush1.msra.mxu0 %v395
    %435 = vmatprep.subr.mxu0 0.0
    %436 = vmatpush1.msra.mxu0 0.0
    %437 = vmatprep.subr.mxu0 0.0
    %438 = vmatpush1.msra.mxu0 0.0
    %439 = vmatprep.subr.mxu0 0.0
    %440 = vmatpush1.msra.mxu0 0.0
    %441 = vmatprep.subr.mxu0 0.0
    %442 = vmatpush1.msra.mxu0 0.0
    %443 = vmatprep.subr.mxu0 0.0
    %444 = vmatpush1.msra.mxu0 0.0
    %445 = vmatprep.subr.mxu0 0.0
    %446 = vmatpush1.msra.mxu0 0.0
    %447 = vmatprep.subr.mxu0 0.0
    %448 = vmatpush1.msra.mxu0 0.0
    %449 = vmatprep.subr.mxu0 0.0
    %450 = vmatpush1.msra.mxu0 0.0
    %451 = vmatprep.subr.mxu0 0.0
    %452 = vmatpush1.msra.mxu0 0.0
    %453 = vmatprep.subr.mxu0 0.0
    %454 = vmatpush1.msra.mxu0 0.0
    %455 = vmatprep.subr.mxu0 0.0
    %456 = vmatpush1.msra.mxu0 0.0
    %457 = vmatprep.subr.mxu0 0.0
    %458 = vmatpush1.msra.mxu0 0.0
    %459 = vmatprep.subr.mxu0 0.0
    %460 = vmatpush1.msra.mxu0 0.0
    %461 = vmatprep.subr.mxu0 0.0
    %462 = vmatpush1.msra.mxu0 0.0
    %463 = vmatprep.subr.mxu0 0.0
    %464 = vmatpush1.msra.mxu0 0.0
    %465 = vmatprep.subr.mxu0 0.0
    %466 = vmatpush1.msra.mxu0 0.0
    %467 = vmatprep.mubr.f32.mxu0 0.0
    %468 = vmatmul.mubr.f32.gmra.mrb[0].mxu0 %v379
    %v469 = vpop.f32.mrb[0].mxu0
    %v470 = vadd.f32 %v401, %v469
    %v471 = vpop.f32.mrb[0].mxu0
    %472 = vdwg.mxu0
    %v473 = vmax.f32 %v470, 0.0
    %474 = vst [vmem:[#allocation11] sm:$0xff] %v473
    // Predicated region
    $region58: #{mlp_forward.1} parent=1 // pred_check
      _
    $region59: #{mlp_forward.1} parent=1 // pred_check_branch
      %476 = sbr.rel (0) target = $region61
    $region60: #{mlp_forward.1} parent=1 // pred_region
      %s478 = ssub.s32 128, 128
      %479 = vsyncadd [#allocation4], %s478
      %s481 = sshll.u32 [#allocation11], 4
      %s482 = int_to_ptr.vmem [resolvable:$true] %s481
      %484 = dma.vmem_to_hbm [thread:$0]  %s482, 128, %s9, [#allocation4]
    $region61: #{mlp_forward.1} parent=1 // pred_fallthru
      _
    // Predicated region
    $region62: #{mlp_forward.1} parent=1 // pred_check
      _
    $region63: #{mlp_forward.1} parent=1 // pred_check_branch
      %486 = sbr.rel (0) target = $region65
    $region64: #{mlp_forward.1} parent=1 // pred_region
      %487 = dma.done [#allocation4], 128
    $region65: #{mlp_forward.1} parent=1 // pred_fallthru
      _
    %488 = vsyncpa [#allocation3], 1
    %489 = vsyncpa [#allocation6], 1
    %490 = vsyncpa [#allocation9], 1
    %491 = vsyncpa [#allocation4], 1

</llo_original>
